<compile_context>
chip_gen: v7x
topology: tpu7x:2x2x1
jax: 0.10.0
libtpu: 0.0.40
codegen_flags: <defaults>
</compile_context>

<pallas_src>
import functools
import math

import jax
import jax.numpy as jnp
from jax import lax
from jax.experimental import pallas as pl
from jax.experimental.pallas import tpu as pltpu


# Explicit scoped-VMEM budget (well under v7x's 64 MiB physical, above the
# 16/32 MiB scoped defaults on v5e / v6e-v7x).
_VMEM_LIMIT_BYTES = 48 * 1024 * 1024


def _cp():
    return pltpu.CompilerParams(dimension_semantics=("parallel",),
                                vmem_limit_bytes=_VMEM_LIMIT_BYTES)


def _rep_spec(arr):
    """Full-array block, same block for every grid step (weights / biases)."""
    nd = arr.ndim
    return pl.BlockSpec(arr.shape, lambda i, _nd=nd: (0,) * _nd)


def _pick_batch_tile(batch, cap, sublane_tiled=False):
    """Largest batch tile that divides `batch`.  If the tile lands on a
    sublane-tiled block dim it must be a multiple of 8 (or the full batch)."""
    if batch <= cap:
        return batch
    for bt in range(min(cap, batch), 0, -1):
        if batch % bt == 0 and (not sublane_tiled or bt % 8 == 0):
            return bt
    return batch


# ----------------------------------------------------------------------------
# Fused TCN residual block kernel
# ----------------------------------------------------------------------------

def _tcn_block_kernel(x_ref, w1_ref, b1_ref, w2_ref, b2_ref, *rest,
                      ksize, dilation, has_proj):
    # x_ref: (1, T, Cin) bf16
    # w1: (K*Cin, Cout) bf16 (conv taps flattened into the contraction dim)
    # b1: (1, Cout) f32    w2: (K*Cout, Cout) bf16   b2: (1, Cout) f32
    # optional wd: (Cin, Cout) bf16, bd: (1, Cout) f32
    # o_ref: (1, T, Cout) bf16
    # scratch: slab1 (T, K*Cin) bf16, slab2 (T, K*Cout) bf16
    if has_proj:
        wd_ref, bd_ref, o_ref, slab1, slab2 = rest
    else:
        o_ref, slab1, slab2 = rest

    T = o_ref.shape[1]
    cout = o_ref.shape[2]
    x = x_ref[0]                                                  # (T, Cin) bf16
    cin = x.shape[1]

    def build_slab(slab_ref, src, c):
        # slab[t, k*c:(k+1)*c] = src[t - (K-1-k)*dilation]  (zeros for t < shift)
        for k in range(ksize):
            shift = (ksize - 1 - k) * dilation
            if shift == 0:
                slab_ref[:, pl.ds(k * c, c)] = src
            else:
                eff = min(shift, T)
                slab_ref[pl.ds(0, eff), pl.ds(k * c, c)] = jnp.zeros(
                    (eff, c), slab_ref.dtype)
                if eff < T:
                    slab_ref[pl.ds(eff, T - eff), pl.ds(k * c, c)] = src[:T - eff, :]

    # conv1 (causal, dilated) + ReLU: ONE matmul, contraction depth K*Cin.
    build_slab(slab1, x, cin)
    h1 = jnp.maximum(
        jnp.dot(slab1[...], w1_ref[...], preferred_element_type=jnp.float32)
        + b1_ref[...], 0.0)                                       # (T, Cout) f32

    # conv2 (causal, dilated) + ReLU.
    build_slab(slab2, h1.astype(slab2.dtype), cout)
    h2 = jnp.maximum(
        jnp.dot(slab2[...], w2_ref[...], preferred_element_type=jnp.float32)
        + b2_ref[...], 0.0)

    # residual (1x1 projection if channel counts differ) + final ReLU.
    if has_proj:
        res = jnp.dot(x, wd_ref[...],
                      preferred_element_type=jnp.float32) + bd_ref[...]
    else:
        res = x.astype(jnp.float32)
    o_ref[0] = jnp.maximum(h2 + res, 0.0).astype(o_ref.dtype)


def tcn_block(x, blk):
    """x: (B, T, Cin) bf16 -> (B, T, Cout) bf16, fused residual TCN block."""
    B, T, Cin = x.shape
    K, d = blk["ksize"], blk["dilation"]
    Cout = blk["w1"].shape[1]
    has_proj = blk["wd"] is not None

    args = [x, blk["w1"], blk["b1"], blk["w2"], blk["b2"]]
    in_specs = [pl.BlockSpec((1, T, Cin), lambda i: (i, 0, 0)),
                _rep_spec(blk["w1"]), _rep_spec(blk["b1"]),
                _rep_spec(blk["w2"]), _rep_spec(blk["b2"])]
    if has_proj:
        args += [blk["wd"], blk["bd"]]
        in_specs += [_rep_spec(blk["wd"]), _rep_spec(blk["bd"])]

    kernel = functools.partial(_tcn_block_kernel, ksize=K, dilation=d,
                               has_proj=has_proj)
    return pl.pallas_call(
        kernel,
        out_shape=jax.ShapeDtypeStruct((B, T, Cout), jnp.bfloat16),
        grid=(B,),
        in_specs=in_specs,
        out_specs=pl.BlockSpec((1, T, Cout), lambda i: (i, 0, 0)),
        scratch_shapes=[pltpu.VMEM((T, K * Cin), jnp.bfloat16),
                        pltpu.VMEM((T, K * Cout), jnp.bfloat16)],
        compiler_params=_cp(),
    )(*args)


# ----------------------------------------------------------------------------
# Fused `com` linear + multi-head self-attention + RNN input projection kernel
# ----------------------------------------------------------------------------

def _com_attn_kernel(*args, n_enc, num_heads, scale, seg_offsets):
    # args: n_enc encoder refs (1, T, C_i) bf16, then
    #   com_w (sumC, Clast), com_b (1, Clast),
    #   wq/bq, wk/bk, wv/bv (Clast, Hd)/(1, Hd), wo (Hd, Hd), bo (1, Hd),
    #   wih (Hd, Clast), rnn_b (1, Clast),
    #   o_ref (1, T, Clast) f32, hs scratch (T, sumC) bf16
    enc = args[:n_enc]
    (com_w_ref, com_b_ref, wq_ref, bq_ref, wk_ref, bk_ref, wv_ref, bv_ref,
     wo_ref, bo_ref, wih_ref, rnnb_ref, o_ref, hs_ref) = args[n_enc:]

    T = o_ref.shape[1]
    Hd = wq_ref.shape[1]
    hd = Hd // num_heads

    # hs = concat(enc outputs, channel axis) built once in VMEM scratch so the
    # `com` linear is ONE wide-K matmul instead of n_enc thin ones.
    for j, e_ref in enumerate(enc):
        hs_ref[:, pl.ds(seg_offsets[j], e_ref.shape[2])] = e_ref[0]

    hn = (jnp.dot(hs_ref[...], com_w_ref[...],
                  preferred_element_type=jnp.float32)
          + com_b_ref[...]).astype(jnp.bfloat16)                  # (T, Clast)

    # Q/K/V projections; 1/sqrt(hd) folded into q; single bf16 cast per tensor.
    q = ((jnp.dot(hn, wq_ref[...], preferred_element_type=jnp.float32)
          + bq_ref[...]) * scale).astype(jnp.bfloat16)
    k = (jnp.dot(hn, wk_ref[...], preferred_element_type=jnp.float32)
         + bk_ref[...]).astype(jnp.bfloat16)
    v = (jnp.dot(hn, wv_ref[...], preferred_element_type=jnp.float32)
         + bv_ref[...]).astype(jnp.bfloat16)

    # Heads sliced in-register; output projection folded into the head loop:
    #   concat_h(head_h) @ wo == sum_h head_h @ wo[h*hd:(h+1)*hd, :]
    out = jnp.zeros((T, Hd), jnp.float32) + bo_ref[...]
    # TODO(synk): flash-tile over KV blocks (online softmax) for long T so the
    #             (T, T) score tile stays bounded on v7x's 64 MiB VMEM.
    for h in range(num_heads):
        lo = h * hd
        qh, kh, vh = q[:, lo:lo + hd], k[:, lo:lo + hd], v[:, lo:lo + hd]
        s = lax.dot_general(qh, kh, (((1,), (1,)), ((), ())),
                            preferred_element_type=jnp.float32)   # (T, T)
        s = s - jnp.max(s, axis=-1, keepdims=True)
        p = jnp.exp(s)
        p = p * pl.reciprocal(jnp.sum(p, axis=-1, keepdims=True), approx=True)
        oh = jnp.dot(p.astype(jnp.bfloat16), vh,
                     preferred_element_type=jnp.float32)          # (T, hd)
        out = out + jnp.dot(oh.astype(jnp.bfloat16), wo_ref[pl.ds(lo, hd), :],
                            preferred_element_type=jnp.float32)

    # RNN input projection (x_t @ W_ih + b_ih + b_hh) hoisted out of the
    # sequential recurrence and fused here as one big GEMM.
    o_ref[0] = (jnp.dot(out.astype(jnp.bfloat16), wih_ref[...],
                        preferred_element_type=jnp.float32) + rnnb_ref[...])


def com_attention_rnn_in(enc_outs, params, num_heads):
    """enc_outs: list of (B, T, C_i) bf16 -> (B, T, C_last) f32 RNN
    pre-activations (attention output already projected through W_ih + bias)."""
    B, T, _ = enc_outs[0].shape
    n_enc = len(enc_outs)
    seg_dims = [e.shape[2] for e in enc_outs]
    seg_offsets, off = [], 0
    for c in seg_dims:
        seg_offsets.append(off)
        off += c
    sum_c = off
    c_last = params["com_w"].shape[1]
    Hd = params["wq"].shape[1]
    hd = Hd // num_heads

    weights = [params["com_w"], params["com_b"],
               params["wq"], params["bq"], params["wk"], params["bk"],
               params["wv"], params["bv"], params["wo"], params["bo"],
               params["rnn_wih"], params["rnn_b"]]
    args = list(enc_outs) + weights
    in_specs = ([pl.BlockSpec((1, T, c), lambda i: (i, 0, 0)) for c in seg_dims]
                + [_rep_spec(w) for w in weights])

    kernel = functools.partial(_com_attn_kernel, n_enc=n_enc,
                               num_heads=num_heads,
                               scale=1.0 / math.sqrt(hd),
                               seg_offsets=tuple(seg_offsets))
    return pl.pallas_call(
        kernel,
        out_shape=jax.ShapeDtypeStruct((B, T, c_last), jnp.float32),
        grid=(B,),
        in_specs=in_specs,
        out_specs=pl.BlockSpec((1, T, c_last), lambda i: (i, 0, 0)),
        scratch_shapes=[pltpu.VMEM((T, sum_c), jnp.bfloat16)],
        compiler_params=_cp(),
    )(*args)


# ----------------------------------------------------------------------------
# Elman RNN recurrence kernels (input GEMM already hoisted into the attention
# kernel; only the (B,H)@(H,H) recurrent matmul + tanh stays on the serial
# critical path).  Batch-tiled grid, 'parallel' semantics.
# ----------------------------------------------------------------------------

def _rnn_unrolled_kernel(xp_ref, whh_ref, o_ref):
    # xp_ref: (Bt, T, H) f32 precomputed attn@W_ih + b; whh: (H, H) bf16
    # o_ref:  (Bt, T, H) f32.  Static time unroll -> batch-first blocks and
    # static stores, so NO HBM transposes are needed around this kernel.
    bt, t_len, h_dim = xp_ref.shape
    xp = xp_ref[...]
    h = jnp.zeros((bt, h_dim), jnp.float32)
    for t in range(t_len):
        h = jnp.tanh(xp[:, t, :] +
                     jnp.dot(h.astype(jnp.bfloat16), whh_ref[...],
                             preferred_element_type=jnp.float32))
        o_ref[:, t, :] = h


def _rnn_scan_kernel(xp_ref, whh_ref, o_ref):
    # Time-major fallback for long T: xp_ref / o_ref are (T, Bt, H).
    t_len, bt, _ = xp_ref.shape
    h_dim = o_ref.shape[2]

    def step(t, h):
        h = jnp.tanh(xp_ref[t] +
                     jnp.dot(h.astype(jnp.bfloat16), whh_ref[...],
                             preferred_element_type=jnp.float32))
        o_ref[t] = h
        return h

    lax.fori_loop(0, t_len, step, jnp.zeros((bt, h_dim), jnp.float32))


def rnn(xp, whh, *, unroll_t=128):
    """xp: (B, T, H) f32 = attn @ W_ih + b (from the fused attention kernel)."""
    B, T, H = xp.shape
    if T <= unroll_t:
        bt = _pick_batch_tile(B, 128)
        return pl.pallas_call(
            _rnn_unrolled_kernel,
            out_shape=jax.ShapeDtypeStruct((B, T, H), jnp.float32),
            grid=(B // bt,),
            in_specs=[pl.BlockSpec((bt, T, H), lambda i: (i, 0, 0)),
                      _rep_spec(whh)],
            out_specs=pl.BlockSpec((bt, T, H), lambda i: (i, 0, 0)),
            compiler_params=_cp(),
        )(xp, whh)

    # Long-sequence fallback: time-major recurrence bracketed by transposes.
    bt = _pick_batch_tile(B, 128, sublane_tiled=True)
    xp_tm = jnp.transpose(xp, (1, 0, 2))
    out_tm = pl.pallas_call(
        _rnn_scan_kernel,
        out_shape=jax.ShapeDtypeStruct((T, B, H), jnp.float32),
        grid=(B // bt,),
        in_specs=[pl.BlockSpec((T, bt, H), lambda i: (0, i, 0)),
                  _rep_spec(whh)],
        out_specs=pl.BlockSpec((T, bt, H), lambda i: (0, i, 0)),
        compiler_params=_cp(),
    )(xp_tm, whh)
    return jnp.transpose(out_tm, (1, 0, 2))


# ----------------------------------------------------------------------------
# Parameter init (deterministic, synthetic).  Weights bf16, biases f32.
# ----------------------------------------------------------------------------

def init_params(key, input_dim, num_channels, hidden_dim, num_heads, ksize=2):
    keys = iter(jax.random.split(key, 64))

    def w(shape, s=0.1):
        return (s * jax.random.normal(next(keys), shape)).astype(jnp.bfloat16)

    def b(shape, s=0.1):
        return (s * jax.random.normal(next(keys), shape)).astype(jnp.float32)

    encoder = []
    in_c = input_dim
    for i, out_c in enumerate(num_channels):
        encoder.append(dict(
            ksize=ksize,
            dilation=2 ** i,                       # dilated encoder TCN
            # conv taps pre-flattened into the contraction dim: (K*Cin, Cout)
            w1=w((ksize * in_c, out_c)), b1=b((1, out_c)),
            w2=w((ksize * out_c, out_c)), b2=b((1, out_c)),
            wd=w((in_c, out_c)) if in_c != out_c else None,
            bd=b((1, out_c)) if in_c != out_c else None,
        ))
        in_c = out_c

    c_last = num_channels[-1]
    return dict(
        encoder=encoder,
        # self.com = nn.Linear(sum(num_channels), num_channels[-1])
        com_w=w((sum(num_channels), c_last)), com_b=b((1, c_last)),
        # Attention(num_heads, num_channels[-1], hidden_dim): Q/K/V + out proj
        wq=w((c_last, hidden_dim)), bq=b((1, hidden_dim)),
        wk=w((c_last, hidden_dim)), bk=b((1, hidden_dim)),
        wv=w((c_last, hidden_dim)), bv=b((1, hidden_dim)),
        wo=w((hidden_dim, hidden_dim)), bo=b((1, hidden_dim)),
        # nn.RNN(hidden_dim, num_channels[-1], batch_first=True)
        # (weights pre-transposed; b = b_ih + b_hh combined)
        rnn_wih=w((hidden_dim, c_last)),
        rnn_whh=w((c_last, c_last)),
        rnn_b=b((1, c_last)),
    )


# ----------------------------------------------------------------------------
# DTC forward
# ----------------------------------------------------------------------------

def dtc_forward(params, x, num_heads):
    """x: (B, T, input_dim) -> (B, T, num_channels[-1])  (hn of the reference)."""
    y = x.astype(jnp.bfloat16)

    # ---- encoder (TCN): one fused kernel per residual block
    enc_outs = []
    for blk in params["encoder"]:
        y = tcn_block(y, blk)
        enc_outs.append(y)

    # ---- fused: hn = self.com(hs); hn = self.attention(hn); hn @ W_ih + bias
    xp = com_attention_rnn_in(enc_outs, params, num_heads)   # (B, T, C_last) f32

    # ---- recurrent part of self.rnn (tanh Elman, h0 = 0, batch_first)
    return rnn(xp, params["rnn_whh"])                         # (B, T, C_last) f32


# ----------------------------------------------------------------------------
# Demo
# ----------------------------------------------------------------------------

if __name__ == "__main__":
    key = jax.random.PRNGKey(0)
    kx, kp = jax.random.split(key)

    B, T = 2, 8
    input_dim = 4
    num_channels = [8, 16]
    hidden_dim = 32
    num_heads = 4

    x = jax.random.normal(kx, (B, T, input_dim), dtype=jnp.float32)
    params = init_params(kp, input_dim, num_channels, hidden_dim, num_heads)

    out = dtc_forward(params, x, num_heads)
    out = jax.block_until_ready(out)

    assert out.shape == (B, T, num_channels[-1]), out.shape
    assert bool(jnp.all(jnp.isfinite(out)))
    print("KERNEL_OK")
</pallas_src>

<mosaic_0001>
module attributes {stable_mosaic.version = 11 : i64} {
  func.func @_tcn_block_kernel(%arg0: i32, %arg1: memref<1x8x4xbf16, #tpu.memory_space<vmem>>, %arg2: memref<8x8xbf16, #tpu.memory_space<vmem>>, %arg3: memref<1x8xf32, #tpu.memory_space<vmem>>, %arg4: memref<16x8xbf16, #tpu.memory_space<vmem>>, %arg5: memref<1x8xf32, #tpu.memory_space<vmem>>, %arg6: memref<4x8xbf16, #tpu.memory_space<vmem>>, %arg7: memref<1x8xf32, #tpu.memory_space<vmem>>, %arg8: memref<1x8x8xbf16, #tpu.memory_space<vmem>>, %arg9: memref<8x8xbf16, #tpu.memory_space<vmem>>, %arg10: memref<8x16xbf16, #tpu.memory_space<vmem>>) attributes {dimension_semantics = [#tpu.dimension_semantics<parallel>], iteration_bounds = array<i64: 2>, scalar_prefetch = 0 : i64, scratch_operands = 2 : i64, tpu.core_type = #tpu.core_type<tc>, window_params = [{transform_indices = @transform_0, window_bounds = array<i64: 1, 8, 4>}, {pipeline_mode = #tpu.pipeline_mode<synchronous>, transform_indices = @transform_1, window_bounds = array<i64: 8, 8>}, {pipeline_mode = #tpu.pipeline_mode<synchronous>, transform_indices = @transform_2, window_bounds = array<i64: 1, 8>}, {pipeline_mode = #tpu.pipeline_mode<synchronous>, transform_indices = @transform_3, window_bounds = array<i64: 16, 8>}, {pipeline_mode = #tpu.pipeline_mode<synchronous>, transform_indices = @transform_4, window_bounds = array<i64: 1, 8>}, {pipeline_mode = #tpu.pipeline_mode<synchronous>, transform_indices = @transform_5, window_bounds = array<i64: 4, 8>}, {pipeline_mode = #tpu.pipeline_mode<synchronous>, transform_indices = @transform_6, window_bounds = array<i64: 1, 8>}, {transform_indices = @transform_7, window_bounds = array<i64: 1, 8, 8>}]} {
    %c0 = arith.constant 0 : index
    %c0_0 = arith.constant 0 : index
    %c0_1 = arith.constant 0 : index
    %0 = vector.load %arg1[%c0, %c0_0, %c0_1] : memref<1x8x4xbf16, #tpu.memory_space<vmem>>, vector<1x8x4xbf16>
    %1 = vector.shape_cast %0 : vector<1x8x4xbf16> to vector<8x4xbf16>
    %cst = arith.constant 0.000000e+00 : bf16
    %2 = vector.broadcast %cst : bf16 to vector<1x4xbf16>
    %c0_2 = arith.constant 0 : index
    %c0_3 = arith.constant 0 : index
    %3 = vector.load %arg9[%c0_2, %c0_3] : memref<8x8xbf16, #tpu.memory_space<vmem>>, vector<1x4xbf16>
    tpu.vector_store %arg9[%c0_2, %c0_3], %2 {strides = array<i32>} : memref<8x8xbf16, #tpu.memory_space<vmem>>, vector<1x4xbf16>,
    %4 = vector.extract_strided_slice %1 {offsets = [0, 0], sizes = [7, 4], strides = [1, 1]} : vector<8x4xbf16> to vector<7x4xbf16>
    %c1 = arith.constant 1 : index
    %c0_4 = arith.constant 0 : index
    %5 = vector.load %arg9[%c1, %c0_4] : memref<8x8xbf16, #tpu.memory_space<vmem>>, vector<7x4xbf16>
    tpu.vector_store %arg9[%c1, %c0_4], %4 {strides = array<i32>} : memref<8x8xbf16, #tpu.memory_space<vmem>>, vector<7x4xbf16>,
    %c0_5 = arith.constant 0 : index
    %c4 = arith.constant 4 : index
    %6 = vector.load %arg9[%c0_5, %c4] : memref<8x8xbf16, #tpu.memory_space<vmem>>, vector<8x4xbf16>
    tpu.vector_store %arg9[%c0_5, %c4], %1 {strides = array<i32>} : memref<8x8xbf16, #tpu.memory_space<vmem>>, vector<8x4xbf16>,
    %c0_6 = arith.constant 0 : index
    %c0_7 = arith.constant 0 : index
    %7 = vector.load %arg9[%c0_6, %c0_7] : memref<8x8xbf16, #tpu.memory_space<vmem>>, vector<8x8xbf16>
    %c0_8 = arith.constant 0 : index
    %c0_9 = arith.constant 0 : index
    %8 = vector.load %arg2[%c0_8, %c0_9] : memref<8x8xbf16, #tpu.memory_space<vmem>>, vector<8x8xbf16>
    %cst_10 = arith.constant dense<0.000000e+00> : vector<8x8xf32>
    %9 = tpu.matmul %7, %8, %cst_10 {dimension_numbers = #tpu.dot_dimension_numbers<[1], [0], [0], [1], [0, 0, 1, 1], [], []>} : vector<8x8xbf16>, vector<8x8xbf16>, vector<8x8xf32> -> vector<8x8xf32>
    %c0_11 = arith.constant 0 : index
    %c0_12 = arith.constant 0 : index
    %10 = vector.load %arg3[%c0_11, %c0_12] : memref<1x8xf32, #tpu.memory_space<vmem>>, vector<1x8xf32>
    %11 = vector.broadcast %10 : vector<1x8xf32> to vector<8x8xf32>
    %12 = arith.addf %9, %11 : vector<8x8xf32>
    %cst_13 = arith.constant 0.000000e+00 : f32
    %13 = vector.broadcast %cst_13 : f32 to vector<8x8xf32>
    %14 = arith.maximumf %12, %13 : vector<8x8xf32>
    %15 = arith.truncf %14 : vector<8x8xf32> to vector<8x8xbf16>
    %cst_14 = arith.constant 0.000000e+00 : bf16
    %16 = vector.broadcast %cst_14 : bf16 to vector<1x8xbf16>
    %c0_15 = arith.constant 0 : index
    %c0_16 = arith.constant 0 : index
    %17 = vector.load %arg10[%c0_15, %c0_16] : memref<8x16xbf16, #tpu.memory_space<vmem>>, vector<1x8xbf16>
    tpu.vector_store %arg10[%c0_15, %c0_16], %16 {strides = array<i32>} : memref<8x16xbf16, #tpu.memory_space<vmem>>, vector<1x8xbf16>,
    %18 = vector.extract_strided_slice %15 {offsets = [0, 0], sizes = [7, 8], strides = [1, 1]} : vector<8x8xbf16> to vector<7x8xbf16>
    %c1_17 = arith.constant 1 : index
    %c0_18 = arith.constant 0 : index
    %19 = vector.load %arg10[%c1_17, %c0_18] : memref<8x16xbf16, #tpu.memory_space<vmem>>, vector<7x8xbf16>
    tpu.vector_store %arg10[%c1_17, %c0_18], %18 {strides = array<i32>} : memref<8x16xbf16, #tpu.memory_space<vmem>>, vector<7x8xbf16>,
    %c0_19 = arith.constant 0 : index
    %c8 = arith.constant 8 : index
    %20 = vector.load %arg10[%c0_19, %c8] : memref<8x16xbf16, #tpu.memory_space<vmem>>, vector<8x8xbf16>
    tpu.vector_store %arg10[%c0_19, %c8], %15 {strides = array<i32>} : memref<8x16xbf16, #tpu.memory_space<vmem>>, vector<8x8xbf16>,
    %c0_20 = arith.constant 0 : index
    %c0_21 = arith.constant 0 : index
    %21 = vector.load %arg10[%c0_20, %c0_21] : memref<8x16xbf16, #tpu.memory_space<vmem>>, vector<8x16xbf16>
    %c0_22 = arith.constant 0 : index
    %c0_23 = arith.constant 0 : index
    %22 = vector.load %arg4[%c0_22, %c0_23] : memref<16x8xbf16, #tpu.memory_space<vmem>>, vector<16x8xbf16>
    %cst_24 = arith.constant dense<0.000000e+00> : vector<8x8xf32>
    %23 = tpu.matmul %21, %22, %cst_24 {dimension_numbers = #tpu.dot_dimension_numbers<[1], [0], [0], [1], [0, 0, 1, 1], [], []>} : vector<8x16xbf16>, vector<16x8xbf16>, vector<8x8xf32> -> vector<8x8xf32>
    %c0_25 = arith.constant 0 : index
    %c0_26 = arith.constant 0 : index
    %24 = vector.load %arg5[%c0_25, %c0_26] : memref<1x8xf32, #tpu.memory_space<vmem>>, vector<1x8xf32>
    %25 = vector.broadcast %24 : vector<1x8xf32> to vector<8x8xf32>
    %26 = arith.addf %23, %25 : vector<8x8xf32>
    %cst_27 = arith.constant 0.000000e+00 : f32
    %27 = vector.broadcast %cst_27 : f32 to vector<8x8xf32>
    %28 = arith.maximumf %26, %27 : vector<8x8xf32>
    %c0_28 = arith.constant 0 : index
    %c0_29 = arith.constant 0 : index
    %29 = vector.load %arg6[%c0_28, %c0_29] : memref<4x8xbf16, #tpu.memory_space<vmem>>, vector<4x8xbf16>
    %cst_30 = arith.constant dense<0.000000e+00> : vector<8x8xf32>
    %30 = tpu.matmul %1, %29, %cst_30 {dimension_numbers = #tpu.dot_dimension_numbers<[1], [0], [0], [1], [0, 0, 1, 1], [], []>} : vector<8x4xbf16>, vector<4x8xbf16>, vector<8x8xf32> -> vector<8x8xf32>
    %c0_31 = arith.constant 0 : index
    %c0_32 = arith.constant 0 : index
    %31 = vector.load %arg7[%c0_31, %c0_32] : memref<1x8xf32, #tpu.memory_space<vmem>>, vector<1x8xf32>
    %32 = vector.broadcast %31 : vector<1x8xf32> to vector<8x8xf32>
    %33 = arith.addf %30, %32 : vector<8x8xf32>
    %34 = arith.addf %28, %33 : vector<8x8xf32>
    %cst_33 = arith.constant 0.000000e+00 : f32
    %35 = vector.broadcast %cst_33 : f32 to vector<8x8xf32>
    %36 = arith.maximumf %34, %35 : vector<8x8xf32>
    %37 = arith.truncf %36 : vector<8x8xf32> to vector<8x8xbf16>
    %c0_34 = arith.constant 0 : index
    %c0_35 = arith.constant 0 : index
    %c0_36 = arith.constant 0 : index
    %38 = vector.load %arg8[%c0_34, %c0_35, %c0_36] : memref<1x8x8xbf16, #tpu.memory_space<vmem>>, vector<1x8x8xbf16>
    %39 = vector.shape_cast %38 : vector<1x8x8xbf16> to vector<8x8xbf16>
    %40 = vector.shape_cast %37 : vector<8x8xbf16> to vector<1x8x8xbf16>
    tpu.vector_store %arg8[%c0_34, %c0_35, %c0_36], %40 {strides = array<i32>} : memref<1x8x8xbf16, #tpu.memory_space<vmem>>, vector<1x8x8xbf16>,
    return
  }
  func.func @transform_0(%arg0: i32) -> (i32, i32, i32) {
    %c0_i32 = arith.constant 0 : i32
    %c0_i32_0 = arith.constant 0 : i32
    %c0_i32_1 = arith.constant 0 : i32
    return %arg0, %c0_i32, %c0_i32_0 : i32, i32, i32
  }
  func.func @transform_1(%arg0: i32) -> (i32, i32) {
    %c0_i32 = arith.constant 0 : i32
    %c0_i32_0 = arith.constant 0 : i32
    %c0_i32_1 = arith.constant 0 : i32
    return %c0_i32, %c0_i32_0 : i32, i32
  }
  func.func @transform_2(%arg0: i32) -> (i32, i32) {
    %c0_i32 = arith.constant 0 : i32
    %c0_i32_0 = arith.constant 0 : i32
    %c0_i32_1 = arith.constant 0 : i32
    return %c0_i32, %c0_i32_0 : i32, i32
  }
  func.func @transform_3(%arg0: i32) -> (i32, i32) {
    %c0_i32 = arith.constant 0 : i32
    %c0_i32_0 = arith.constant 0 : i32
    %c0_i32_1 = arith.constant 0 : i32
    return %c0_i32, %c0_i32_0 : i32, i32
  }
  func.func @transform_4(%arg0: i32) -> (i32, i32) {
    %c0_i32 = arith.constant 0 : i32
    %c0_i32_0 = arith.constant 0 : i32
    %c0_i32_1 = arith.constant 0 : i32
    return %c0_i32, %c0_i32_0 : i32, i32
  }
  func.func @transform_5(%arg0: i32) -> (i32, i32) {
    %c0_i32 = arith.constant 0 : i32
    %c0_i32_0 = arith.constant 0 : i32
    %c0_i32_1 = arith.constant 0 : i32
    return %c0_i32, %c0_i32_0 : i32, i32
  }
  func.func @transform_6(%arg0: i32) -> (i32, i32) {
    %c0_i32 = arith.constant 0 : i32
    %c0_i32_0 = arith.constant 0 : i32
    %c0_i32_1 = arith.constant 0 : i32
    return %c0_i32, %c0_i32_0 : i32, i32
  }
  func.func @transform_7(%arg0: i32) -> (i32, i32, i32) {
    %c0_i32 = arith.constant 0 : i32
    %c0_i32_0 = arith.constant 0 : i32
    %c0_i32_1 = arith.constant 0 : i32
    return %arg0, %c0_i32, %c0_i32_0 : i32, i32, i32
  }
}

</mosaic_0001>

<llo_original>
// kernel: tpu_custom_call.1
$region0: #{tpu_custom_call.1}
  #allocation0 [shape = 'u32[]', space=smem, size = 0x4, offset = 0x4, fixed_abs, tag = 'smem constant byte address 0x4 - core index']
  #allocation1 [shape = 'u32[144,128]{1,0:T(1,128)}', space=vmem, size = 0x12000, scoped, tag = 'internal scratch']
  #allocation2 [shape = 'bf16[8,8]{1,0:T(8,128)(2,1)}', space=vmem, size = 0x800, scoped, tag = 'scratch operand']
  #allocation3 [shape = 'bf16[8,16]{1,0:T(8,128)(2,1)}', space=vmem, size = 0x800, scoped, tag = 'scratch operand']
  %s0 = inlined_call_operand.vmem [shape: bf16[2,8,4], index: 0, kind: input, shape index: {}]
  %s1 = inlined_call_operand.vmem [shape: bf16[8,8], index: 1, kind: input, shape index: {}]
  %s2 = inlined_call_operand.vmem [shape: f32[1,8], index: 2, kind: input, shape index: {}]
  %s3 = inlined_call_operand.vmem [shape: bf16[16,8], index: 3, kind: input, shape index: {}]
  %s4 = inlined_call_operand.vmem [shape: f32[1,8], index: 4, kind: input, shape index: {}]
  %s5 = inlined_call_operand.vmem [shape: bf16[4,8], index: 5, kind: input, shape index: {}]
  %s6 = inlined_call_operand.vmem [shape: f32[1,8], index: 6, kind: input, shape index: {}]
  %s7 = inlined_call_operand.hbm [shape: bf16[2,8,8], index: 7, kind: output, shape index: {}]
  %s8 = sld [smem:[#allocation0]]
  $region61: #{tpu_custom_call.1} parent=0
    _
  %s10 = ssub.s32 1, %s8
  %s11 = scalar_select 0, %s10, %s8
  $region1: #{tpu_custom_call.1} parent=0
    #allocation4 [shape = 'u8[4096]{0}', space=vmem, size = 0x1000, scoped, tag = 'output window, operand 0']
    #allocation5 [shape = 's32[2]{0}', space=sflag, size = 0x8, scoped, tag = 'scoped memory for tpu_custom_call.1']
    %12 = vsyncpa [#allocation5], 0
    %s13 = scalar_lea.sflag [#allocation5], 1
    %14 = vsyncpa %s13, 0
    loop: start=0, step=1, limit=4
    $region2: #{tpu_custom_call.1} parent=1 // loop_pre_header
      _
    $region3: #{tpu_custom_call.1} parent=1 // loop_header
      %s16 = sphi 0, %s20
      %p17 = scmp.ge.s32.totalorder %s16, 4
      %s26 = sphi 0, %s28
      %s29 = sphi 0, %s26
      %s30 = sphi 0, %s29
      %s46 = sphi 0, %s30
      %s50 = sphi 0, %s50
      %s52 = sphi 0, %s50
      %s53 = sphi 0, %s52
      %s67 = sphi 0, %s53
      %s71 = sphi 0, %s71
      %s73 = sphi 0, %s71
      %s74 = sphi 0, %s73
      %s88 = sphi 0, %s74
      %s92 = sphi 0, %s92
      %s94 = sphi 0, %s92
      %s95 = sphi 0, %s94
      %s109 = sphi 0, %s95
      %s113 = sphi 0, %s113
      %s115 = sphi 0, %s113
      %s116 = sphi 0, %s115
      %s130 = sphi 0, %s116
      %s134 = sphi 0, %s134
      %s136 = sphi 0, %s134
      %s137 = sphi 0, %s136
      %s151 = sphi 0, %s137
      %s155 = sphi 0, %s155
      %s157 = sphi 0, %s155
      %s158 = sphi 0, %s157
      %s172 = sphi 0, %s158
      %s178 = sphi 0, %s180
      %s181 = sphi 0, %s178
      %s182 = sphi 0, %s181
      %s198 = sphi 0, %s182
    $region4: #{tpu_custom_call.1} parent=1 // loop_header_branch
      %19 = sbr.rel (%p17) target = $region8
    $region5: #{tpu_custom_call.1} parent=1 // loop_body
      %s21 = ssub.s32 %s16, 1
      %s22 = ssub.s32 %s16, 2
      %s23 = sadd.s32 %s16, 1
      %s24 = ssub.s32 %s16, %s23
      %p25 = scmp.eq.s32.totalorder %s24, 0
      %s27 = sadd.s32 %s26, 1
      %s28 = scalar_select %p25, %s26, %s27
      %p31 = pneg %p25
      %p32 = scmp.eq.s32.totalorder %s16, 1
      %p33 = por %p31, %p32
      %p34 = scmp.ne.s32.totalorder %s26, %s29
      %p35 = scmp.eq.s32.totalorder %s16, 0
      %p36 = por %p34, %p35
      %p37 = scmp.ne.s32.totalorder %s26, %s29
      %p38 = scmp.eq.s32.totalorder %s21, 1
      %p39 = por %p37, %p38
      %p40 = scmp.ne.s32.totalorder %s29, %s30
      %p41 = scmp.eq.s32.totalorder %s21, 0
      %p42 = por %p40, %p41
      %p43 = scmp.ne.s32.totalorder %s29, %s30
      %p44 = scmp.eq.s32.totalorder %s22, 1
      %p45 = por %p43, %p44
      %p47 = scmp.ne.s32.totalorder %s30, %s46
      %p48 = scmp.eq.s32.totalorder %s22, 0
      %p49 = por %p47, %p48
      %s51 = sadd.s32 %s50, 1
      %p54 = scmp.eq.s32.totalorder %s16, 1
      %p55 = scmp.ne.s32.totalorder %s50, %s52
      %p56 = scmp.eq.s32.totalorder %s16, 0
      %p57 = por %p55, %p56
      %p58 = scmp.ne.s32.totalorder %s50, %s52
      %p59 = scmp.eq.s32.totalorder %s21, 1
      %p60 = por %p58, %p59
      %p61 = scmp.ne.s32.totalorder %s52, %s53
      %p62 = scmp.eq.s32.totalorder %s21, 0
      %p63 = por %p61, %p62
      %p64 = scmp.ne.s32.totalorder %s52, %s53
      %p65 = scmp.eq.s32.totalorder %s22, 1
      %p66 = por %p64, %p65
      %p68 = scmp.ne.s32.totalorder %s53, %s67
      %p69 = scmp.eq.s32.totalorder %s22, 0
      %p70 = por %p68, %p69
      %s72 = sadd.s32 %s71, 1
      %p75 = scmp.eq.s32.totalorder %s16, 1
      %p76 = scmp.ne.s32.totalorder %s71, %s73
      %p77 = scmp.eq.s32.totalorder %s16, 0
      %p78 = por %p76, %p77
      %p79 = scmp.ne.s32.totalorder %s71, %s73
      %p80 = scmp.eq.s32.totalorder %s21, 1
      %p81 = por %p79, %p80
      %p82 = scmp.ne.s32.totalorder %s73, %s74
      %p83 = scmp.eq.s32.totalorder %s21, 0
      %p84 = por %p82, %p83
      %p85 = scmp.ne.s32.totalorder %s73, %s74
      %p86 = scmp.eq.s32.totalorder %s22, 1
      %p87 = por %p85, %p86
      %p89 = scmp.ne.s32.totalorder %s74, %s88
      %p90 = scmp.eq.s32.totalorder %s22, 0
      %p91 = por %p89, %p90
      %s93 = sadd.s32 %s92, 1
      %p96 = scmp.eq.s32.totalorder %s16, 1
      %p97 = scmp.ne.s32.totalorder %s92, %s94
      %p98 = scmp.eq.s32.totalorder %s16, 0
      %p99 = por %p97, %p98
      %p100 = scmp.ne.s32.totalorder %s92, %s94
      %p101 = scmp.eq.s32.totalorder %s21, 1
      %p102 = por %p100, %p101
      %p103 = scmp.ne.s32.totalorder %s94, %s95
      %p104 = scmp.eq.s32.totalorder %s21, 0
      %p105 = por %p103, %p104
      %p106 = scmp.ne.s32.totalorder %s94, %s95
      %p107 = scmp.eq.s32.totalorder %s22, 1
      %p108 = por %p106, %p107
      %p110 = scmp.ne.s32.totalorder %s95, %s109
      %p111 = scmp.eq.s32.totalorder %s22, 0
      %p112 = por %p110, %p111
      %s114 = sadd.s32 %s113, 1
      %p117 = scmp.eq.s32.totalorder %s16, 1
      %p118 = scmp.ne.s32.totalorder %s113, %s115
      %p119 = scmp.eq.s32.totalorder %s16, 0
      %p120 = por %p118, %p119
      %p121 = scmp.ne.s32.totalorder %s113, %s115
      %p122 = scmp.eq.s32.totalorder %s21, 1
      %p123 = por %p121, %p122
      %p124 = scmp.ne.s32.totalorder %s115, %s116
      %p125 = scmp.eq.s32.totalorder %s21, 0
      %p126 = por %p124, %p125
      %p127 = scmp.ne.s32.totalorder %s115, %s116
      %p128 = scmp.eq.s32.totalorder %s22, 1
      %p129 = por %p127, %p128
      %p131 = scmp.ne.s32.totalorder %s116, %s130
      %p132 = scmp.eq.s32.totalorder %s22, 0
      %p133 = por %p131, %p132
      %s135 = sadd.s32 %s134, 1
      %p138 = scmp.eq.s32.totalorder %s16, 1
      %p139 = scmp.ne.s32.totalorder %s134, %s136
      %p140 = scmp.eq.s32.totalorder %s16, 0
      %p141 = por %p139, %p140
      %p142 = scmp.ne.s32.totalorder %s134, %s136
      %p143 = scmp.eq.s32.totalorder %s21, 1
      %p144 = por %p142, %p143
      %p145 = scmp.ne.s32.totalorder %s136, %s137
      %p146 = scmp.eq.s32.totalorder %s21, 0
      %p147 = por %p145, %p146
      %p148 = scmp.ne.s32.totalorder %s136, %s137
      %p149 = scmp.eq.s32.totalorder %s22, 1
      %p150 = por %p148, %p149
      %p152 = scmp.ne.s32.totalorder %s137, %s151
      %p153 = scmp.eq.s32.totalorder %s22, 0
      %p154 = por %p152, %p153
      %s156 = sadd.s32 %s155, 1
      %p159 = scmp.eq.s32.totalorder %s16, 1
      %p160 = scmp.ne.s32.totalorder %s155, %s157
      %p161 = scmp.eq.s32.totalorder %s16, 0
      %p162 = por %p160, %p161
      %p163 = scmp.ne.s32.totalorder %s155, %s157
      %p164 = scmp.eq.s32.totalorder %s21, 1
      %p165 = por %p163, %p164
      %p166 = scmp.ne.s32.totalorder %s157, %s158
      %p167 = scmp.eq.s32.totalorder %s21, 0
      %p168 = por %p166, %p167
      %p169 = scmp.ne.s32.totalorder %s157, %s158
      %p170 = scmp.eq.s32.totalorder %s22, 1
      %p171 = por %p169, %p170
      %p173 = scmp.ne.s32.totalorder %s158, %s172
      %p174 = scmp.eq.s32.totalorder %s22, 0
      %p175 = por %p173, %p174
      %s176 = ssub.s32 %s16, %s23
      %p177 = scmp.eq.s32.totalorder %s176, 0
      %s179 = sadd.s32 %s178, 1
      %s180 = scalar_select %p177, %s178, %s179
      %p183 = pneg %p177
      %p184 = scmp.eq.s32.totalorder %s16, 1
      %p185 = por %p183, %p184
      %p186 = scmp.ne.s32.totalorder %s178, %s181
      %p187 = scmp.eq.s32.totalorder %s16, 0
      %p188 = por %p186, %p187
      %p189 = scmp.ne.s32.totalorder %s178, %s181
      %p190 = scmp.eq.s32.totalorder %s21, 1
      %p191 = por %p189, %p190
      %p192 = scmp.ne.s32.totalorder %s181, %s182
      %p193 = scmp.eq.s32.totalorder %s21, 0
      %p194 = por %p192, %p193
      %p195 = scmp.ne.s32.totalorder %s181, %s182
      %p196 = scmp.eq.s32.totalorder %s22, 1
      %p197 = por %p195, %p196
      %p199 = scmp.ne.s32.totalorder %s182, %s198
      %p200 = scmp.eq.s32.totalorder %s22, 0
      %p201 = por %p199, %p200
      %p202 = scmp.le.s32.totalorder 1, %s16
      %p203 = scmp.lt.s32.totalorder %s16, 3
      %p204 = pnand %p202, %p203
      %p205 = pneg %p204
      // Predicated region
      $region9: #{tpu_custom_call.1} parent=5 // pred_check
        _
      $region10: #{tpu_custom_call.1} parent=5 // pred_check_branch
        %207 = sbr.rel (%p204) target = $region12
      $region11: #{tpu_custom_call.1} parent=5 // pred_region
        %s208 = ssub.s32 %s16, 1
        // Predicated region
        $region13: #{tpu_custom_call.1} parent=11 // pred_check
          %p209 = pneg %p63
        $region14: #{tpu_custom_call.1} parent=11 // pred_check_branch
          %211 = sbr.rel (%p209) target = $region16
        $region15: #{tpu_custom_call.1} parent=11 // pred_region
          _
        $region16: #{tpu_custom_call.1} parent=11 // pred_fallthru
          _
        // Predicated region
        $region17: #{tpu_custom_call.1} parent=11 // pred_check
          %p212 = pneg %p84
        $region18: #{tpu_custom_call.1} parent=11 // pred_check_branch
          %214 = sbr.rel (%p212) target = $region20
        $region19: #{tpu_custom_call.1} parent=11 // pred_region
          _
        $region20: #{tpu_custom_call.1} parent=11 // pred_fallthru
          _
        // Predicated region
        $region21: #{tpu_custom_call.1} parent=11 // pred_check
          %p215 = pneg %p105
        $region22: #{tpu_custom_call.1} parent=11 // pred_check_branch
          %217 = sbr.rel (%p215) target = $region24
        $region23: #{tpu_custom_call.1} parent=11 // pred_region
          _
        $region24: #{tpu_custom_call.1} parent=11 // pred_fallthru
          _
        // Predicated region
        $region25: #{tpu_custom_call.1} parent=11 // pred_check
          %p218 = pneg %p126
        $region26: #{tpu_custom_call.1} parent=11 // pred_check_branch
          %220 = sbr.rel (%p218) target = $region28
        $region27: #{tpu_custom_call.1} parent=11 // pred_region
          _
        $region28: #{tpu_custom_call.1} parent=11 // pred_fallthru
          _
        // Predicated region
        $region29: #{tpu_custom_call.1} parent=11 // pred_check
          %p221 = pneg %p147
        $region30: #{tpu_custom_call.1} parent=11 // pred_check_branch
          %223 = sbr.rel (%p221) target = $region32
        $region31: #{tpu_custom_call.1} parent=11 // pred_region
          _
        $region32: #{tpu_custom_call.1} parent=11 // pred_fallthru
          _
        // Predicated region
        $region33: #{tpu_custom_call.1} parent=11 // pred_check
          %p224 = pneg %p168
        $region34: #{tpu_custom_call.1} parent=11 // pred_check_branch
          %226 = sbr.rel (%p224) target = $region36
        $region35: #{tpu_custom_call.1} parent=11 // pred_region
          _
        $region36: #{tpu_custom_call.1} parent=11 // pred_fallthru
          _
      $region12: #{tpu_custom_call.1} parent=5 // pred_fallthru
        _
      %p227 = scmp.lt.s32.totalorder %s16, 2
      // Predicated region
      $region37: #{tpu_custom_call.1} parent=5 // pred_check
        %p228 = pneg %p227
      $region38: #{tpu_custom_call.1} parent=5 // pred_check_branch
        %230 = sbr.rel (%p228) target = $region40
      $region39: #{tpu_custom_call.1} parent=5 // pred_region
        // Predicated region
        $region41: #{tpu_custom_call.1} parent=39 // pred_check
          %p231 = pneg %p36
        $region42: #{tpu_custom_call.1} parent=39 // pred_check_branch
          %233 = sbr.rel (%p231) target = $region44
        $region43: #{tpu_custom_call.1} parent=39 // pred_region
          %p234 = scmp.lt.s32.totalorder %s16, 1
          %s235 = scalar_select %p234, %s16, 1
          %s236 = smul.addr %s235, 4
          %s237 = scalar_lea.vmem %s0, %s236
        $region44: #{tpu_custom_call.1} parent=39 // pred_fallthru
          _
      $region40: #{tpu_custom_call.1} parent=5 // pred_fallthru
        _
      %p238 = scmp.le.s32.totalorder 1, %s16
      %p239 = scmp.lt.s32.totalorder %s16, 3
      %p240 = pnand %p238, %p239
      %p241 = pneg %p240
      // Predicated region
      $region45: #{tpu_custom_call.1} parent=5 // pred_check
        _
      $region46: #{tpu_custom_call.1} parent=5 // pred_check_branch
        %243 = sbr.rel (%p240) target = $region48
      $region47: #{tpu_custom_call.1} parent=5 // pred_region
        %s244 = ssub.s32 %s16, 1
        %p245 = scmp.lt.s32.totalorder %s21, 1
        %s246 = scalar_select %p245, %s21, 1
        %s247 = smul.addr %s246, 4
        %s248 = scalar_lea.vmem %s0, %s247
        %p249 = pneg %p42
        %p250 = pneg %p39
        %p251 = pneg %p63
        %p252 = pneg %p60
        %p253 = pneg %p84
        %p254 = pneg %p81
        %p255 = pneg %p105
        %p256 = pneg %p102
        %p257 = pneg %p126
        %p258 = pneg %p123
        %p259 = pneg %p147
        %p260 = pneg %p144
        %p261 = pneg %p168
        %p262 = pneg %p165
        %p263 = pneg %p194
        %p264 = pneg %p191
        %s265 = sand.u32 %s181, 1
        %s266 = scalar_lea.sflag [#allocation5], %s265
        %s267 = sand.u32 %s181, 1
        %s268 = smul.addr %s267, 4
        %s269 = scalar_lea.vmem [#allocation4], %s268
        %p270 = scmp.lt.s32.totalorder %s21, 1
        %s271 = scalar_select %p270, %s21, 1
        %s272 = smul.addr %s271, 4
        %s273 = scalar_lea.vmem %s0, %s272
        %v275 = vld [vmem:[%s273] sm:$0xf]
        %vm276 = vcmask 24576
        %vm277 = vsmask.f32 256
        %vm278 = vmand %vm276, %vm277
        %v279 = vld [vmem:[#allocation2] sm:$0x1]
        %v280 = vsel %vm278, 0, %v279
        %281 = vst [vmem:[#allocation2] sm:$0x1] %v280
        %v283 = vshrl.u32 %v275, 16
        %v285 = vrot.slane %v283, 7
        %v286 = vshll.u32 %v275, 16
        %v288 = vor.u32 %v285, %v286
        %vm290 = vcmask 27648
        %vm291 = vsmask.f32 7938
        %vm292 = vmand %vm290, %vm291
        %v293 = vld [vmem:[#allocation2] sm:$0xf]
        %v294 = vsel %vm292, %v288, %v293
        %295 = vst [vmem:[#allocation2] sm:$0xf] %v294
        %297 = vrot.lane.b32.xlu0 %v275, 4
        %v298 = vpop.permute.xlu0 %297
        %vm300 = vcmask 60448
        %301 = vst.msk [vmem:[#allocation2] sm:$0xf] %vm300, %v298
        %v302 = vld [vmem:[#allocation2] sm:$0xf]
        %v303 = vld [vmem:[%s1] sm:$0xf]
        %v304 = vld [vmem:[%s2] sm:$0x1]
        %v306 = vlaneseq
        %v307 = vshrl.u32 %v306, 7
        %v308 = vsub.s32 0, %v307
        %v309 = vrot.slane %v304, %v308
        %vm311 = vcmask 64512
        %v313 = vsel %vm311, %v302, 0
        %vm315 = vcmask 1043456
        %v317 = vsel %vm315, %v303, 0
        %319 = vmatprep.subr.bf16.mxu0 0
        %320 = vmatpush1.bf16.msra.mxu0 %v317
        %321 = vmatprep.subr.bf16.mxu0 0
        %322 = vmatpush1.bf16.msra.mxu0 0
        %323 = vmatprep.subr.bf16.mxu0 0
        %324 = vmatpush1.bf16.msra.mxu0 0
        %325 = vmatprep.subr.bf16.mxu0 0
        %326 = vmatpush1.bf16.msra.mxu0 0
        %327 = vmatprep.subr.bf16.mxu0 0
        %328 = vmatpush1.bf16.msra.mxu0 0
        %329 = vmatprep.subr.bf16.mxu0 0
        %330 = vmatpush1.bf16.msra.mxu0 0
        %331 = vmatprep.subr.bf16.mxu0 0
        %332 = vmatpush1.bf16.msra.mxu0 0
        %333 = vmatprep.subr.bf16.mxu0 0
        %334 = vmatpush1.bf16.msra.mxu0 0
        %335 = vmatprep.subr.bf16.mxu0 0
        %336 = vmatpush1.bf16.msra.mxu0 0
        %337 = vmatprep.subr.bf16.mxu0 0
        %338 = vmatpush1.bf16.msra.mxu0 0
        %339 = vmatprep.subr.bf16.mxu0 0
        %340 = vmatpush1.bf16.msra.mxu0 0
        %341 = vmatprep.subr.bf16.mxu0 0
        %342 = vmatpush1.bf16.msra.mxu0 0
        %343 = vmatprep.subr.bf16.mxu0 0
        %344 = vmatpush1.bf16.msra.mxu0 0
        %345 = vmatprep.subr.bf16.mxu0 0
        %346 = vmatpush1.bf16.msra.mxu0 0
        %347 = vmatprep.subr.bf16.mxu0 0
        %348 = vmatpush1.bf16.msra.mxu0 0
        %349 = vmatprep.subr.bf16.mxu0 0
        %350 = vmatpush1.bf16.msra.mxu0 0
        %351 = vmatprep.mubr.bf16.mxu0 0
        %352 = vmatmul.mubr.bf16.gmra.mrb[0].mxu0 %v313
        %v353 = vpop.f32.mrb[0].mxu0
        %v354 = vadd.f32 %v309, %v353
        %v355 = vpop.f32.mrb[0].mxu0
        %v356 = vpop.f32.mrb[0].mxu0
        %v357 = vpop.f32.mrb[0].mxu0
        %358 = vdwg.mxu0
        %v359 = vmax.f32 %v354, 0.0
        %v360 = vpack.c.bf16 %v359, %v359
        %vm361 = vcmask 57344
        %vm362 = vmand %vm361, %vm277
        %v363 = vld [vmem:[#allocation3] sm:$0x1]
        %v364 = vsel %vm362, 0, %v363
        %365 = vst [vmem:[#allocation3] sm:$0x1] %v364
        %v367 = vunpack.c.l.b16 %v360
        %v368 = vpack.c.b16 %v367, %v367
        %v370 = vshrl.u32 %v368, 16
        %v372 = vrot.slane %v370, 7
        %v373 = vshll.u32 %v368, 16
        %v375 = vor.u32 %v372, %v373
        %vm377 = vcmask 60416
        %vm378 = vmand %vm377, %vm291
        %v379 = vld [vmem:[#allocation3] sm:$0xf]
        %v380 = vsel %vm378, %v375, %v379
        %381 = vst [vmem:[#allocation3] sm:$0xf] %v380
        %382 = vrot.lane.b32.xlu0 %v368, 8
        %v383 = vpop.permute.xlu0 %382
        %vm385 = vcmask 126016
        %386 = vst.msk [vmem:[#allocation3] sm:$0xf] %vm385, %v383
        %v387 = vld [vmem:[#allocation3] sm:$0xf]
        %v388 = vld [vmem:[%s3] sm:$0xf]
        %v389 = vld [vmem:[%s3 + $0x4] sm:$0xf]
        %v390 = vld [vmem:[%s4] sm:$0x1]
        %v392 = vlaneseq
        %v393 = vshrl.u32 %v392, 7
        %v394 = vsub.s32 0, %v393
        %v395 = vrot.slane %v390, %v394
        %v399 = vunpack.c.l.b16 %v388
        %v400 = vunpack.c.l.b16 %v389
        %v401 = vpack.c.b16 %v400, %v399
        %vm403 = vcmask 130048
        %v405 = vsel %vm403, %v387, 0
        %407 = vmatprep.subr.bf16.mxu0 0
        %408 = vmatpush1.bf16.msra.mxu0 %v401
        %409 = vmatprep.subr.bf16.mxu0 0
        %410 = vmatpush1.bf16.msra.mxu0 0
        %411 = vmatprep.subr.bf16.mxu0 0
        %412 = vmatpush1.bf16.msra.mxu0 0
        %413 = vmatprep.subr.bf16.mxu0 0
        %414 = vmatpush1.bf16.msra.mxu0 0
        %415 = vmatprep.subr.bf16.mxu0 0
        %416 = vmatpush1.bf16.msra.mxu0 0
        %417 = vmatprep.subr.bf16.mxu0 0
        %418 = vmatpush1.bf16.msra.mxu0 0
        %419 = vmatprep.subr.bf16.mxu0 0
        %420 = vmatpush1.bf16.msra.mxu0 0
        %421 = vmatprep.subr.bf16.mxu0 0
        %422 = vmatpush1.bf16.msra.mxu0 0
        %423 = vmatprep.subr.bf16.mxu0 0
        %424 = vmatpush1.bf16.msra.mxu0 0
        %425 = vmatprep.subr.bf16.mxu0 0
        %426 = vmatpush1.bf16.msra.mxu0 0
        %427 = vmatprep.subr.bf16.mxu0 0
        %428 = vmatpush1.bf16.msra.mxu0 0
        %429 = vmatprep.subr.bf16.mxu0 0
        %430 = vmatpush1.bf16.msra.mxu0 0
        %431 = vmatprep.subr.bf16.mxu0 0
        %432 = vmatpush1.bf16.msra.mxu0 0
        %433 = vmatprep.subr.bf16.mxu0 0
        %434 = vmatpush1.bf16.msra.mxu0 0
        %435 = vmatprep.subr.bf16.mxu0 0
        %436 = vmatpush1.bf16.msra.mxu0 0
        %437 = vmatprep.subr.bf16.mxu0 0
        %438 = vmatpush1.bf16.msra.mxu0 0
        %439 = vmatprep.mubr.bf16.mxu0 0
        %440 = vmatmul.mubr.bf16.gmra.mrb[0].mxu0 %v405
        %v441 = vpop.f32.mrb[0].mxu0
        %v442 = vadd.f32 %v395, %v441
        %v443 = vpop.f32.mrb[0].mxu0
        %v444 = vpop.f32.mrb[0].mxu0
        %v445 = vpop.f32.mrb[0].mxu0
        %446 = vdwg.mxu0
        %v447 = vmax.f32 %v442, 0.0
        %v448 = vld [vmem:[%s5] sm:$0x3]
        %v449 = vld [vmem:[%s6] sm:$0x1]
        %v451 = vlaneseq
        %v452 = vshrl.u32 %v451, 7
        %v453 = vsub.s32 0, %v452
        %v454 = vrot.slane %v449, %v453
        %vm456 = vcmask 31744
        %v457 = vsel %vm456, %v275, 0
        %vm459 = vcmask 1041408
        %v461 = vsel %vm459, %v448, 0
        %463 = vmatprep.subr.bf16.mxu0 0
        %464 = vmatpush1.bf16.msra.mxu0 %v461
        %465 = vmatprep.subr.bf16.mxu0 0
        %466 = vmatpush1.bf16.msra.mxu0 0
        %467 = vmatprep.subr.bf16.mxu0 0
        %468 = vmatpush1.bf16.msra.mxu0 0
        %469 = vmatprep.subr.bf16.mxu0 0
        %470 = vmatpush1.bf16.msra.mxu0 0
        %471 = vmatprep.subr.bf16.mxu0 0
        %472 = vmatpush1.bf16.msra.mxu0 0
        %473 = vmatprep.subr.bf16.mxu0 0
        %474 = vmatpush1.bf16.msra.mxu0 0
        %475 = vmatprep.subr.bf16.mxu0 0
        %476 = vmatpush1.bf16.msra.mxu0 0
        %477 = vmatprep.subr.bf16.mxu0 0
        %478 = vmatpush1.bf16.msra.mxu0 0
        %479 = vmatprep.subr.bf16.mxu0 0
        %480 = vmatpush1.bf16.msra.mxu0 0
        %481 = vmatprep.subr.bf16.mxu0 0
        %482 = vmatpush1.bf16.msra.mxu0 0
        %483 = vmatprep.subr.bf16.mxu0 0
        %484 = vmatpush1.bf16.msra.mxu0 0
        %485 = vmatprep.subr.bf16.mxu0 0
        %486 = vmatpush1.bf16.msra.mxu0 0
        %487 = vmatprep.subr.bf16.mxu0 0
        %488 = vmatpush1.bf16.msra.mxu0 0
        %489 = vmatprep.subr.bf16.mxu0 0
        %490 = vmatpush1.bf16.msra.mxu0 0
        %491 = vmatprep.subr.bf16.mxu0 0
        %492 = vmatpush1.bf16.msra.mxu0 0
        %493 = vmatprep.subr.bf16.mxu0 0
        %494 = vmatpush1.bf16.msra.mxu0 0
        %495 = vmatprep.mubr.bf16.mxu0 0
        %496 = vmatmul.mubr.bf16.gmra.mrb[0].mxu0 %v457
        %v497 = vpop.f32.mrb[0].mxu0
        %v498 = vadd.f32 %v454, %v497
        %v499 = vpop.f32.mrb[0].mxu0
        %v500 = vpop.f32.mrb[0].mxu0
        %v501 = vpop.f32.mrb[0].mxu0
        %502 = vdwg.mxu0
        %v503 = vadd.f32 %v447, %v498
        %v504 = vmax.f32 %v503, 0.0
        %v505 = vpack.c.bf16 %v504, %v504
        %vm506 = vcmask 60416
        %507 = vst.msk [vmem:[%s269] sm:$0xf] %vm506, %v505
        %s508 = sand.u32 %s181, 1
        %s509 = scalar_lea.sflag [#allocation5], %s508
        %s510 = sand.u32 %s181, 1
        %s511 = smul.addr %s510, 4
        %s512 = scalar_lea.vmem [#allocation4], %s511
        // Predicated region
        $region49: #{tpu_custom_call.1} parent=47 // pred_check
          %p513 = pneg %p191
        $region50: #{tpu_custom_call.1} parent=47 // pred_check_branch
          %515 = sbr.rel (%p513) target = $region52
        $region51: #{tpu_custom_call.1} parent=47 // pred_region
          %s517 = ssub.s32 64, 64
          %518 = vsyncadd %s509, %s517
          %s519 = smul.addr %s21, 64
          %s520 = scalar_lea.hbm %s7, %s519
          %s522 = sshll.u32 %s512, 4
          %s523 = int_to_ptr.vmem [resolvable:$true] %s522
          %525 = dma.vmem_to_hbm [thread:$0]  %s523, 64, %s520, %s509
        $region52: #{tpu_custom_call.1} parent=47 // pred_fallthru
          _
      $region48: #{tpu_custom_call.1} parent=5 // pred_fallthru
        _
      %p526 = scmp.le.s32.totalorder 2, %s16
      // Predicated region
      $region53: #{tpu_custom_call.1} parent=5 // pred_check
        %p527 = pneg %p526
      $region54: #{tpu_custom_call.1} parent=5 // pred_check_branch
        %529 = sbr.rel (%p527) target = $region56
      $region55: #{tpu_custom_call.1} parent=5 // pred_region
        %s530 = ssub.s32 %s16, 2
        // Predicated region
        $region57: #{tpu_custom_call.1} parent=55 // pred_check
          %p531 = pneg %p197
        $region58: #{tpu_custom_call.1} parent=55 // pred_check_branch
          %533 = sbr.rel (%p531) target = $region60
        $region59: #{tpu_custom_call.1} parent=55 // pred_region
          %s534 = sand.u32 %s182, 1
          %s535 = scalar_lea.sflag [#allocation5], %s534
          %s536 = sand.u32 %s182, 1
          %s537 = smul.addr %s536, 4
          %s538 = scalar_lea.vmem [#allocation4], %s537
          %539 = dma.done %s535, 64
        $region60: #{tpu_custom_call.1} parent=55 // pred_fallthru
          _
      $region56: #{tpu_custom_call.1} parent=5 // pred_fallthru
        _
    $region6: #{tpu_custom_call.1} parent=1 // loop_footer
      %s20 = sadd.s32 1, %s16
    $region7: #{tpu_custom_call.1} parent=1 // loop_footer_branch
      %15 = sbr.rel target = $region3
    $region8: #{tpu_custom_call.1} parent=1 // loop_exit
      _
    %540 = vsyncpa [#allocation5], 1
    %s541 = scalar_lea.sflag [#allocation5], 1
    %542 = vsyncpa %s541, 1

</llo_original>
